<compile_context>
chip_gen: v7x
topology: tpu7x:2x2x1
jax: 0.10.0
libtpu: 0.0.40
codegen_flags: <defaults>
</compile_context>

<pallas_src>
import jax
import jax.numpy as jnp
from jax.experimental import pallas as pl
from jax.experimental.pallas import tpu as pltpu

# ---------------- problem sizes (small, consistent with the forward) ---------
B = 2        # batch size
T_TEXT = 8   # encoder (text) sequence length
T_LAB = 2    # decoder (label) sequence length  (label token + eos)
H = 32       # hidden size
V = 128      # vocab size (lane-aligned)
N = B * T_LAB
ROWS = 8     # N padded up to the 8-sublane vreg height
DEC_START_ID = 0   # T5 decoder start / pad token id (synthetic stand-in)


def sentinel_kernel(text_ids_ref, label_ids_ref, w_ref, out_ref):
    """text_ids_ref : [B, T_TEXT] i32 SMEM (scalar prefetch)
       label_ids_ref: [B, T_LAB]  i32 SMEM (scalar prefetch)
       w_ref        : [V, V] bf16 VMEM  (precomputed tok_embed @ lm_head)
       out_ref      : [1, V] f32 VMEM lane-dense; lane0 = loss, lane1 = accuracy."""
    row_iota = jax.lax.broadcasted_iota(jnp.int32, (ROWS, V), 0)    # [ROWS, V]
    vocab_iota = jax.lax.broadcasted_iota(jnp.int32, (ROWS, V), 1)  # [ROWS, V]

    # --- build selection matrix S (so logits = S @ W) and label one-hot L ----
    #   S[b*T_LAB+t] = mean_t'(onehot(text_ids[b,t'])) + onehot(dec_in[b,t])
    #   dec_in = labels shifted right with the decoder start token.
    S = jnp.zeros((ROWS, V), jnp.float32)
    L = jnp.zeros((ROWS, V), jnp.bool_)
    inv_t = jnp.float32(1.0 / T_TEXT)
    for b in range(B):
        in_batch = jnp.logical_and(row_iota >= b * T_LAB,
                                   row_iota < (b + 1) * T_LAB)
        # mean-pooled encoder state: accumulate raw token counts only
        # (compare + add per token), mask + scale once per batch.
        counts = jnp.zeros((ROWS, V), jnp.float32)
        for t in range(T_TEXT):
            tok = text_ids_ref[b, t]                                 # SMEM scalar
            counts = counts + (vocab_iota == tok).astype(jnp.float32)
        S = S + jnp.where(in_batch, counts * inv_t, 0.0)
        # decoder-input one-hots + label one-hots (only B*T_LAB iterations)
        for t in range(T_LAB):
            n = b * T_LAB + t
            row_match = row_iota == n
            dec_tok = DEC_START_ID if t == 0 else label_ids_ref[b, t - 1]
            S = S + jnp.where(jnp.logical_and(row_match, vocab_iota == dec_tok),
                              1.0, 0.0)
            L = jnp.logical_or(
                L, jnp.logical_and(row_match, vocab_iota == label_ids_ref[b, t]))

    # --- fused decoder + LM head: single MXU matmul, bf16 operands, f32 acc ---
    # S values are exact multiples of 1/8 in [0, 2], so the bf16 cast is exact.
    logits = jnp.dot(S.astype(jnp.bfloat16), w_ref[...],
                     preferred_element_type=jnp.float32)             # [ROWS, V] f32

    # --- token-level softmax cross entropy (the T5 training loss) -------------
    m = jnp.max(logits, axis=-1, keepdims=True)                      # [ROWS, 1]
    shifted = logits - m                 # reused for exp() and the argmax test
    lse = m + jnp.log(jnp.sum(jnp.exp(shifted), axis=-1, keepdims=True))
    true_logit = jnp.sum(jnp.where(L, logits, 0.0), axis=-1, keepdims=True)
    row_col = jax.lax.broadcasted_iota(jnp.int32, (ROWS, 1), 0)
    row_valid = row_col < N              # mask the padded sublane rows
    per_tok = jnp.where(row_valid, lse - true_logit, 0.0)
    loss = jnp.sum(per_tok, axis=0, keepdims=True) * jnp.float32(1.0 / N)  # [1, 1]

    # --- accuracy: argmax(softmax(logits[:, 0, :])) == label[:, 0] ------------
    # softmax is monotone -> argmax(logits); min-index-achieving-max matches
    # torch.argmax tie-breaking.  Exact because m is the max of the SAME f32
    # logits (f32 accumulation kept even with bf16 MXU operands).
    pred = jnp.min(jnp.where(shifted == 0.0, vocab_iota, V),
                   axis=-1, keepdims=True)                            # [ROWS, 1]
    # label column built directly from SMEM scalars (no lane reduction needed)
    label_col = jnp.zeros((ROWS, 1), jnp.int32)
    for b in range(B):
        label_col = jnp.where(row_col == b * T_LAB, label_ids_ref[b, 0], label_col)
    first_pos = (row_col % T_LAB) == 0
    hit = jnp.logical_and(jnp.logical_and(first_pos, row_valid), pred == label_col)
    acc = jnp.sum(jnp.where(hit, 1.0, 0.0), axis=0, keepdims=True) \
        * jnp.float32(1.0 / B)                                        # [1, 1]

    # --- single lane-dense output slab: lane 0 = loss, lane 1 = accuracy ------
    lane = jax.lax.broadcasted_iota(jnp.int32, (1, V), 1)
    out_ref[...] = jnp.where(lane == 0, loss, jnp.where(lane == 1, acc, 0.0))


def sentinel_forward(text_ids, label_ids, tok_embed, lm_head):
    """Training-mode Sentinel.forward: returns (t5_loss, t5_accuracy)."""
    # Fuse the two weight matmuls outside the kernel (weights-only, V x V):
    #   logits = (S @ tok_embed) @ lm_head == S @ (tok_embed @ lm_head)
    w_fused = jnp.dot(tok_embed.astype(jnp.float32),
                      lm_head.astype(jnp.float32)).astype(jnp.bfloat16)

    out = pl.pallas_call(
        sentinel_kernel,
        out_shape=jax.ShapeDtypeStruct((1, V), jnp.float32),
        grid_spec=pltpu.PrefetchScalarGridSpec(
            num_scalar_prefetch=2,               # text_ids, label_ids -> SMEM
            grid=(1,),
            in_specs=[pl.BlockSpec((V, V), lambda *_: (0, 0))],   # fused W
            out_specs=pl.BlockSpec((1, V), lambda *_: (0, 0)),
        ),
        compiler_params=pltpu.CompilerParams(
            dimension_semantics=("arbitrary",)),
        cost_estimate=pl.CostEstimate(
            flops=2 * ROWS * V * V,
            transcendentals=ROWS * V + ROWS,
            bytes_accessed=2 * V * V + 4 * V
                           + 4 * (B * T_TEXT + B * T_LAB)),
    )(text_ids.astype(jnp.int32), label_ids.astype(jnp.int32), w_fused)
    return out[0, 0], out[0, 1]


if __name__ == "__main__":
    key = jax.random.PRNGKey(0)
    k_emb, k_head, k_text, k_lab = jax.random.split(key, 4)

    # deterministic synthetic parameters (stand-in for the pretrained T5)
    tok_embed = jax.random.normal(k_emb, (V, H), jnp.float32) * 0.02
    lm_head = jax.random.normal(k_head, (H, V), jnp.float32) * 0.02

    # deterministic "tokenized" inputs (stand-in for t5_tokenizer output)
    text_ids = jax.random.randint(k_text, (B, T_TEXT), 0, V, jnp.int32)
    label_ids = jax.random.randint(k_lab, (B, T_LAB), 0, V, jnp.int32)

    loss, acc = jax.jit(sentinel_forward)(text_ids, label_ids, tok_embed, lm_head)
    jax.block_until_ready((loss, acc))
    print("KERNEL_OK")
</pallas_src>

<mosaic_0001>
module attributes {stable_mosaic.version = 11 : i64} {
  func.func @sentinel_kernel(%arg0: i32, %arg1: memref<2x8xi32, #tpu.memory_space<smem>>, %arg2: memref<2x2xi32, #tpu.memory_space<smem>>, %arg3: memref<128x128xbf16, #tpu.memory_space<vmem>>, %arg4: memref<1x128xf32, #tpu.memory_space<vmem>>) attributes {dimension_semantics = [#tpu.dimension_semantics<arbitrary>], iteration_bounds = array<i64: 1>, scalar_prefetch = 2 : i64, scratch_operands = 0 : i64, tpu.core_type = #tpu.core_type<tc>, window_params = [{pipeline_mode = #tpu.pipeline_mode<synchronous>, transform_indices = @transform_0, window_bounds = array<i64: 128, 128>}, {pipeline_mode = #tpu.pipeline_mode<synchronous>, transform_indices = @transform_1, window_bounds = array<i64: 1, 128>}]} {
    %0 = tpu.iota {dimensions = array<i32: 0>} : vector<8x128xi32>
    %1 = tpu.iota {dimensions = array<i32: 1>} : vector<8x128xi32>
    %cst = arith.constant 0.000000e+00 : f32
    %2 = vector.broadcast %cst : f32 to vector<8x128xf32>
    %false = arith.constant false
    %3 = vector.broadcast %false : i1 to vector<8x128xi1>
    %c0_i32 = arith.constant 0 : i32
    %4 = vector.broadcast %c0_i32 : i32 to vector<8x128xi32>
    %5 = arith.cmpi sge, %0, %4 : vector<8x128xi32>
    %c2_i32 = arith.constant 2 : i32
    %6 = vector.broadcast %c2_i32 : i32 to vector<8x128xi32>
    %7 = arith.cmpi slt, %0, %6 : vector<8x128xi32>
    %8 = arith.andi %5, %7 : vector<8x128xi1>
    %cst_0 = arith.constant 0.000000e+00 : f32
    %9 = vector.broadcast %cst_0 : f32 to vector<8x128xf32>
    %c0 = arith.constant 0 : index
    %c0_1 = arith.constant 0 : index
    %10 = memref.load %arg1[%c0, %c0_1] : memref<2x8xi32, #tpu.memory_space<smem>>
    %11 = vector.broadcast %10 : i32 to vector<8x128xi32>
    %12 = arith.cmpi eq, %1, %11 : vector<8x128xi32>
    %13 = arith.extui %12 : vector<8x128xi1> to vector<8x128xi32>
    %14 = arith.sitofp %13 : vector<8x128xi32> to vector<8x128xf32>
    %15 = arith.addf %9, %14 : vector<8x128xf32>
    %c0_2 = arith.constant 0 : index
    %c1 = arith.constant 1 : index
    %16 = memref.load %arg1[%c0_2, %c1] : memref<2x8xi32, #tpu.memory_space<smem>>
    %17 = vector.broadcast %16 : i32 to vector<8x128xi32>
    %18 = arith.cmpi eq, %1, %17 : vector<8x128xi32>
    %19 = arith.extui %18 : vector<8x128xi1> to vector<8x128xi32>
    %20 = arith.sitofp %19 : vector<8x128xi32> to vector<8x128xf32>
    %21 = arith.addf %15, %20 : vector<8x128xf32>
    %c0_3 = arith.constant 0 : index
    %c2 = arith.constant 2 : index
    %22 = memref.load %arg1[%c0_3, %c2] : memref<2x8xi32, #tpu.memory_space<smem>>
    %23 = vector.broadcast %22 : i32 to vector<8x128xi32>
    %24 = arith.cmpi eq, %1, %23 : vector<8x128xi32>
    %25 = arith.extui %24 : vector<8x128xi1> to vector<8x128xi32>
    %26 = arith.sitofp %25 : vector<8x128xi32> to vector<8x128xf32>
    %27 = arith.addf %21, %26 : vector<8x128xf32>
    %c0_4 = arith.constant 0 : index
    %c3 = arith.constant 3 : index
    %28 = memref.load %arg1[%c0_4, %c3] : memref<2x8xi32, #tpu.memory_space<smem>>
    %29 = vector.broadcast %28 : i32 to vector<8x128xi32>
    %30 = arith.cmpi eq, %1, %29 : vector<8x128xi32>
    %31 = arith.extui %30 : vector<8x128xi1> to vector<8x128xi32>
    %32 = arith.sitofp %31 : vector<8x128xi32> to vector<8x128xf32>
    %33 = arith.addf %27, %32 : vector<8x128xf32>
    %c0_5 = arith.constant 0 : index
    %c4 = arith.constant 4 : index
    %34 = memref.load %arg1[%c0_5, %c4] : memref<2x8xi32, #tpu.memory_space<smem>>
    %35 = vector.broadcast %34 : i32 to vector<8x128xi32>
    %36 = arith.cmpi eq, %1, %35 : vector<8x128xi32>
    %37 = arith.extui %36 : vector<8x128xi1> to vector<8x128xi32>
    %38 = arith.sitofp %37 : vector<8x128xi32> to vector<8x128xf32>
    %39 = arith.addf %33, %38 : vector<8x128xf32>
    %c0_6 = arith.constant 0 : index
    %c5 = arith.constant 5 : index
    %40 = memref.load %arg1[%c0_6, %c5] : memref<2x8xi32, #tpu.memory_space<smem>>
    %41 = vector.broadcast %40 : i32 to vector<8x128xi32>
    %42 = arith.cmpi eq, %1, %41 : vector<8x128xi32>
    %43 = arith.extui %42 : vector<8x128xi1> to vector<8x128xi32>
    %44 = arith.sitofp %43 : vector<8x128xi32> to vector<8x128xf32>
    %45 = arith.addf %39, %44 : vector<8x128xf32>
    %c0_7 = arith.constant 0 : index
    %c6 = arith.constant 6 : index
    %46 = memref.load %arg1[%c0_7, %c6] : memref<2x8xi32, #tpu.memory_space<smem>>
    %47 = vector.broadcast %46 : i32 to vector<8x128xi32>
    %48 = arith.cmpi eq, %1, %47 : vector<8x128xi32>
    %49 = arith.extui %48 : vector<8x128xi1> to vector<8x128xi32>
    %50 = arith.sitofp %49 : vector<8x128xi32> to vector<8x128xf32>
    %51 = arith.addf %45, %50 : vector<8x128xf32>
    %c0_8 = arith.constant 0 : index
    %c7 = arith.constant 7 : index
    %52 = memref.load %arg1[%c0_8, %c7] : memref<2x8xi32, #tpu.memory_space<smem>>
    %53 = vector.broadcast %52 : i32 to vector<8x128xi32>
    %54 = arith.cmpi eq, %1, %53 : vector<8x128xi32>
    %55 = arith.extui %54 : vector<8x128xi1> to vector<8x128xi32>
    %56 = arith.sitofp %55 : vector<8x128xi32> to vector<8x128xf32>
    %57 = arith.addf %51, %56 : vector<8x128xf32>
    %cst_9 = arith.constant 1.250000e-01 : f32
    %58 = vector.broadcast %cst_9 : f32 to vector<8x128xf32>
    %59 = arith.mulf %57, %58 : vector<8x128xf32>
    %cst_10 = arith.constant 0.000000e+00 : f32
    %60 = vector.broadcast %cst_10 : f32 to vector<8x128xf32>
    %61 = arith.select %8, %59, %60 : vector<8x128xi1>, vector<8x128xf32>
    %62 = arith.addf %2, %61 : vector<8x128xf32>
    %c0_i32_11 = arith.constant 0 : i32
    %63 = vector.broadcast %c0_i32_11 : i32 to vector<8x128xi32>
    %64 = arith.cmpi eq, %0, %63 : vector<8x128xi32>
    %c0_i32_12 = arith.constant 0 : i32
    %65 = vector.broadcast %c0_i32_12 : i32 to vector<8x128xi32>
    %66 = arith.cmpi eq, %1, %65 : vector<8x128xi32>
    %67 = arith.andi %64, %66 : vector<8x128xi1>
    %cst_13 = arith.constant 1.000000e+00 : f32
    %cst_14 = arith.constant 0.000000e+00 : f32
    %68 = vector.broadcast %cst_13 : f32 to vector<8x128xf32>
    %69 = vector.broadcast %cst_14 : f32 to vector<8x128xf32>
    %70 = arith.select %67, %68, %69 : vector<8x128xi1>, vector<8x128xf32>
    %71 = arith.addf %62, %70 : vector<8x128xf32>
    %c0_15 = arith.constant 0 : index
    %c0_16 = arith.constant 0 : index
    %72 = memref.load %arg2[%c0_15, %c0_16] : memref<2x2xi32, #tpu.memory_space<smem>>
    %73 = vector.broadcast %72 : i32 to vector<8x128xi32>
    %74 = arith.cmpi eq, %1, %73 : vector<8x128xi32>
    %75 = arith.andi %64, %74 : vector<8x128xi1>
    %76 = arith.ori %3, %75 : vector<8x128xi1>
    %c1_i32 = arith.constant 1 : i32
    %77 = vector.broadcast %c1_i32 : i32 to vector<8x128xi32>
    %78 = arith.cmpi eq, %0, %77 : vector<8x128xi32>
    %c0_17 = arith.constant 0 : index
    %c0_18 = arith.constant 0 : index
    %79 = memref.load %arg2[%c0_17, %c0_18] : memref<2x2xi32, #tpu.memory_space<smem>>
    %80 = vector.broadcast %79 : i32 to vector<8x128xi32>
    %81 = arith.cmpi eq, %1, %80 : vector<8x128xi32>
    %82 = arith.andi %78, %81 : vector<8x128xi1>
    %cst_19 = arith.constant 1.000000e+00 : f32
    %cst_20 = arith.constant 0.000000e+00 : f32
    %83 = vector.broadcast %cst_19 : f32 to vector<8x128xf32>
    %84 = vector.broadcast %cst_20 : f32 to vector<8x128xf32>
    %85 = arith.select %82, %83, %84 : vector<8x128xi1>, vector<8x128xf32>
    %86 = arith.addf %71, %85 : vector<8x128xf32>
    %c0_21 = arith.constant 0 : index
    %c1_22 = arith.constant 1 : index
    %87 = memref.load %arg2[%c0_21, %c1_22] : memref<2x2xi32, #tpu.memory_space<smem>>
    %88 = vector.broadcast %87 : i32 to vector<8x128xi32>
    %89 = arith.cmpi eq, %1, %88 : vector<8x128xi32>
    %90 = arith.andi %78, %89 : vector<8x128xi1>
    %91 = arith.ori %76, %90 : vector<8x128xi1>
    %c2_i32_23 = arith.constant 2 : i32
    %92 = vector.broadcast %c2_i32_23 : i32 to vector<8x128xi32>
    %93 = arith.cmpi sge, %0, %92 : vector<8x128xi32>
    %c4_i32 = arith.constant 4 : i32
    %94 = vector.broadcast %c4_i32 : i32 to vector<8x128xi32>
    %95 = arith.cmpi slt, %0, %94 : vector<8x128xi32>
    %96 = arith.andi %93, %95 : vector<8x128xi1>
    %cst_24 = arith.constant 0.000000e+00 : f32
    %97 = vector.broadcast %cst_24 : f32 to vector<8x128xf32>
    %c1_25 = arith.constant 1 : index
    %c0_26 = arith.constant 0 : index
    %98 = memref.load %arg1[%c1_25, %c0_26] : memref<2x8xi32, #tpu.memory_space<smem>>
    %99 = vector.broadcast %98 : i32 to vector<8x128xi32>
    %100 = arith.cmpi eq, %1, %99 : vector<8x128xi32>
    %101 = arith.extui %100 : vector<8x128xi1> to vector<8x128xi32>
    %102 = arith.sitofp %101 : vector<8x128xi32> to vector<8x128xf32>
    %103 = arith.addf %97, %102 : vector<8x128xf32>
    %c1_27 = arith.constant 1 : index
    %c1_28 = arith.constant 1 : index
    %104 = memref.load %arg1[%c1_27, %c1_28] : memref<2x8xi32, #tpu.memory_space<smem>>
    %105 = vector.broadcast %104 : i32 to vector<8x128xi32>
    %106 = arith.cmpi eq, %1, %105 : vector<8x128xi32>
    %107 = arith.extui %106 : vector<8x128xi1> to vector<8x128xi32>
    %108 = arith.sitofp %107 : vector<8x128xi32> to vector<8x128xf32>
    %109 = arith.addf %103, %108 : vector<8x128xf32>
    %c1_29 = arith.constant 1 : index
    %c2_30 = arith.constant 2 : index
    %110 = memref.load %arg1[%c1_29, %c2_30] : memref<2x8xi32, #tpu.memory_space<smem>>
    %111 = vector.broadcast %110 : i32 to vector<8x128xi32>
    %112 = arith.cmpi eq, %1, %111 : vector<8x128xi32>
    %113 = arith.extui %112 : vector<8x128xi1> to vector<8x128xi32>
    %114 = arith.sitofp %113 : vector<8x128xi32> to vector<8x128xf32>
    %115 = arith.addf %109, %114 : vector<8x128xf32>
    %c1_31 = arith.constant 1 : index
    %c3_32 = arith.constant 3 : index
    %116 = memref.load %arg1[%c1_31, %c3_32] : memref<2x8xi32, #tpu.memory_space<smem>>
    %117 = vector.broadcast %116 : i32 to vector<8x128xi32>
    %118 = arith.cmpi eq, %1, %117 : vector<8x128xi32>
    %119 = arith.extui %118 : vector<8x128xi1> to vector<8x128xi32>
    %120 = arith.sitofp %119 : vector<8x128xi32> to vector<8x128xf32>
    %121 = arith.addf %115, %120 : vector<8x128xf32>
    %c1_33 = arith.constant 1 : index
    %c4_34 = arith.constant 4 : index
    %122 = memref.load %arg1[%c1_33, %c4_34] : memref<2x8xi32, #tpu.memory_space<smem>>
    %123 = vector.broadcast %122 : i32 to vector<8x128xi32>
    %124 = arith.cmpi eq, %1, %123 : vector<8x128xi32>
    %125 = arith.extui %124 : vector<8x128xi1> to vector<8x128xi32>
    %126 = arith.sitofp %125 : vector<8x128xi32> to vector<8x128xf32>
    %127 = arith.addf %121, %126 : vector<8x128xf32>
    %c1_35 = arith.constant 1 : index
    %c5_36 = arith.constant 5 : index
    %128 = memref.load %arg1[%c1_35, %c5_36] : memref<2x8xi32, #tpu.memory_space<smem>>
    %129 = vector.broadcast %128 : i32 to vector<8x128xi32>
    %130 = arith.cmpi eq, %1, %129 : vector<8x128xi32>
    %131 = arith.extui %130 : vector<8x128xi1> to vector<8x128xi32>
    %132 = arith.sitofp %131 : vector<8x128xi32> to vector<8x128xf32>
    %133 = arith.addf %127, %132 : vector<8x128xf32>
    %c1_37 = arith.constant 1 : index
    %c6_38 = arith.constant 6 : index
    %134 = memref.load %arg1[%c1_37, %c6_38] : memref<2x8xi32, #tpu.memory_space<smem>>
    %135 = vector.broadcast %134 : i32 to vector<8x128xi32>
    %136 = arith.cmpi eq, %1, %135 : vector<8x128xi32>
    %137 = arith.extui %136 : vector<8x128xi1> to vector<8x128xi32>
    %138 = arith.sitofp %137 : vector<8x128xi32> to vector<8x128xf32>
    %139 = arith.addf %133, %138 : vector<8x128xf32>
    %c1_39 = arith.constant 1 : index
    %c7_40 = arith.constant 7 : index
    %140 = memref.load %arg1[%c1_39, %c7_40] : memref<2x8xi32, #tpu.memory_space<smem>>
    %141 = vector.broadcast %140 : i32 to vector<8x128xi32>
    %142 = arith.cmpi eq, %1, %141 : vector<8x128xi32>
    %143 = arith.extui %142 : vector<8x128xi1> to vector<8x128xi32>
    %144 = arith.sitofp %143 : vector<8x128xi32> to vector<8x128xf32>
    %145 = arith.addf %139, %144 : vector<8x128xf32>
    %cst_41 = arith.constant 1.250000e-01 : f32
    %146 = vector.broadcast %cst_41 : f32 to vector<8x128xf32>
    %147 = arith.mulf %145, %146 : vector<8x128xf32>
    %cst_42 = arith.constant 0.000000e+00 : f32
    %148 = vector.broadcast %cst_42 : f32 to vector<8x128xf32>
    %149 = arith.select %96, %147, %148 : vector<8x128xi1>, vector<8x128xf32>
    %150 = arith.addf %86, %149 : vector<8x128xf32>
    %c2_i32_43 = arith.constant 2 : i32
    %151 = vector.broadcast %c2_i32_43 : i32 to vector<8x128xi32>
    %152 = arith.cmpi eq, %0, %151 : vector<8x128xi32>
    %c0_i32_44 = arith.constant 0 : i32
    %153 = vector.broadcast %c0_i32_44 : i32 to vector<8x128xi32>
    %154 = arith.cmpi eq, %1, %153 : vector<8x128xi32>
    %155 = arith.andi %152, %154 : vector<8x128xi1>
    %cst_45 = arith.constant 1.000000e+00 : f32
    %cst_46 = arith.constant 0.000000e+00 : f32
    %156 = vector.broadcast %cst_45 : f32 to vector<8x128xf32>
    %157 = vector.broadcast %cst_46 : f32 to vector<8x128xf32>
    %158 = arith.select %155, %156, %157 : vector<8x128xi1>, vector<8x128xf32>
    %159 = arith.addf %150, %158 : vector<8x128xf32>
    %c1_47 = arith.constant 1 : index
    %c0_48 = arith.constant 0 : index
    %160 = memref.load %arg2[%c1_47, %c0_48] : memref<2x2xi32, #tpu.memory_space<smem>>
    %161 = vector.broadcast %160 : i32 to vector<8x128xi32>
    %162 = arith.cmpi eq, %1, %161 : vector<8x128xi32>
    %163 = arith.andi %152, %162 : vector<8x128xi1>
    %164 = arith.ori %91, %163 : vector<8x128xi1>
    %c3_i32 = arith.constant 3 : i32
    %165 = vector.broadcast %c3_i32 : i32 to vector<8x128xi32>
    %166 = arith.cmpi eq, %0, %165 : vector<8x128xi32>
    %c1_49 = arith.constant 1 : index
    %c0_50 = arith.constant 0 : index
    %167 = memref.load %arg2[%c1_49, %c0_50] : memref<2x2xi32, #tpu.memory_space<smem>>
    %168 = vector.broadcast %167 : i32 to vector<8x128xi32>
    %169 = arith.cmpi eq, %1, %168 : vector<8x128xi32>
    %170 = arith.andi %166, %169 : vector<8x128xi1>
    %cst_51 = arith.constant 1.000000e+00 : f32
    %cst_52 = arith.constant 0.000000e+00 : f32
    %171 = vector.broadcast %cst_51 : f32 to vector<8x128xf32>
    %172 = vector.broadcast %cst_52 : f32 to vector<8x128xf32>
    %173 = arith.select %170, %171, %172 : vector<8x128xi1>, vector<8x128xf32>
    %174 = arith.addf %159, %173 : vector<8x128xf32>
    %c1_53 = arith.constant 1 : index
    %c1_54 = arith.constant 1 : index
    %175 = memref.load %arg2[%c1_53, %c1_54] : memref<2x2xi32, #tpu.memory_space<smem>>
    %176 = vector.broadcast %175 : i32 to vector<8x128xi32>
    %177 = arith.cmpi eq, %1, %176 : vector<8x128xi32>
    %178 = arith.andi %166, %177 : vector<8x128xi1>
    %179 = arith.ori %164, %178 : vector<8x128xi1>
    %180 = arith.truncf %174 : vector<8x128xf32> to vector<8x128xbf16>
    %c0_55 = arith.constant 0 : index
    %c0_56 = arith.constant 0 : index
    %181 = vector.load %arg3[%c0_55, %c0_56] : memref<128x128xbf16, #tpu.memory_space<vmem>>, vector<128x128xbf16>
    %cst_57 = arith.constant dense<0.000000e+00> : vector<8x128xf32>
    %182 = tpu.matmul %180, %181, %cst_57 {dimension_numbers = #tpu.dot_dimension_numbers<[1], [0], [0], [1], [0, 0, 1, 1], [], []>} : vector<8x128xbf16>, vector<128x128xbf16>, vector<8x128xf32> -> vector<8x128xf32>
    %cst_58 = arith.constant dense<0xFF800000> : vector<8xf32>
    %183 = vector.multi_reduction <maximumf>, %182, %cst_58 [1] : vector<8x128xf32> to vector<8xf32>
    %184 = vector.shape_cast %183 : vector<8xf32> to vector<8x1xf32>
    %185 = vector.broadcast %184 : vector<8x1xf32> to vector<8x128xf32>
    %186 = arith.subf %182, %185 : vector<8x128xf32>
    %187 = math.exp %186 : vector<8x128xf32>
    %cst_59 = arith.constant dense<0.000000e+00> : vector<8xf32>
    %188 = vector.multi_reduction <add>, %187, %cst_59 [1] : vector<8x128xf32> to vector<8xf32>
    %189 = vector.shape_cast %188 : vector<8xf32> to vector<8x1xf32>
    %190 = math.log %189 : vector<8x1xf32>
    %191 = arith.addf %184, %190 : vector<8x1xf32>
    %cst_60 = arith.constant 0.000000e+00 : f32
    %192 = vector.broadcast %cst_60 : f32 to vector<8x128xf32>
    %193 = arith.select %179, %182, %192 : vector<8x128xi1>, vector<8x128xf32>
    %cst_61 = arith.constant dense<0.000000e+00> : vector<8xf32>
    %194 = vector.multi_reduction <add>, %193, %cst_61 [1] : vector<8x128xf32> to vector<8xf32>
    %195 = vector.shape_cast %194 : vector<8xf32> to vector<8x1xf32>
    %196 = tpu.iota {dimensions = array<i32: 0>} : vector<8x1xi32>
    %c4_i32_62 = arith.constant 4 : i32
    %197 = vector.broadcast %c4_i32_62 : i32 to vector<8x1xi32>
    %198 = arith.cmpi slt, %196, %197 : vector<8x1xi32>
    %199 = arith.subf %191, %195 : vector<8x1xf32>
    %cst_63 = arith.constant 0.000000e+00 : f32
    %200 = vector.broadcast %cst_63 : f32 to vector<8x1xf32>
    %201 = arith.select %198, %199, %200 : vector<8x1xi1>, vector<8x1xf32>
    %cst_64 = arith.constant dense<0.000000e+00> : vector<1xf32>
    %202 = vector.multi_reduction <add>, %201, %cst_64 [0] : vector<8x1xf32> to vector<1xf32>
    %203 = vector.shape_cast %202 : vector<1xf32> to vector<1x1xf32>
    %cst_65 = arith.constant 2.500000e-01 : f32
    %204 = vector.broadcast %cst_65 : f32 to vector<1x1xf32>
    %205 = arith.mulf %203, %204 : vector<1x1xf32>
    %cst_66 = arith.constant 0.000000e+00 : f32
    %206 = vector.broadcast %cst_66 : f32 to vector<8x128xf32>
    %207 = arith.cmpf oeq, %186, %206 : vector<8x128xf32>
    %c128_i32 = arith.constant 128 : i32
    %208 = vector.broadcast %c128_i32 : i32 to vector<8x128xi32>
    %209 = arith.select %207, %1, %208 : vector<8x128xi1>, vector<8x128xi32>
    %cst_67 = arith.constant dense<2147483647> : vector<8xi32>
    %210 = vector.multi_reduction <minsi>, %209, %cst_67 [1] : vector<8x128xi32> to vector<8xi32>
    %211 = vector.shape_cast %210 : vector<8xi32> to vector<8x1xi32>
    %c0_i32_68 = arith.constant 0 : i32
    %212 = vector.broadcast %c0_i32_68 : i32 to vector<8x1xi32>
    %c0_i32_69 = arith.constant 0 : i32
    %213 = vector.broadcast %c0_i32_69 : i32 to vector<8x1xi32>
    %214 = arith.cmpi eq, %196, %213 : vector<8x1xi32>
    %c0_70 = arith.constant 0 : index
    %c0_71 = arith.constant 0 : index
    %215 = memref.load %arg2[%c0_70, %c0_71] : memref<2x2xi32, #tpu.memory_space<smem>>
    %216 = vector.broadcast %215 : i32 to vector<8x1xi32>
    %217 = arith.select %214, %216, %212 : vector<8x1xi1>, vector<8x1xi32>
    %c2_i32_72 = arith.constant 2 : i32
    %218 = vector.broadcast %c2_i32_72 : i32 to vector<8x1xi32>
    %219 = arith.cmpi eq, %196, %218 : vector<8x1xi32>
    %c1_73 = arith.constant 1 : index
    %c0_74 = arith.constant 0 : index
    %220 = memref.load %arg2[%c1_73, %c0_74] : memref<2x2xi32, #tpu.memory_space<smem>>
    %221 = vector.broadcast %220 : i32 to vector<8x1xi32>
    %222 = arith.select %219, %221, %217 : vector<8x1xi1>, vector<8x1xi32>
    %c2_i32_75 = arith.constant 2 : i32
    %c0_i32_76 = arith.constant 0 : i32
    %223 = arith.cmpi eq, %c2_i32_75, %c0_i32_76 : i32
    %c1_i32_77 = arith.constant 1 : i32
    %224 = arith.select %223, %c1_i32_77, %c2_i32_75 : i32
    %225 = vector.broadcast %224 : i32 to vector<8x1xi32>
    %226 = arith.remsi %196, %225 : vector<8x1xi32>
    %c0_i32_78 = arith.constant 0 : i32
    %227 = vector.broadcast %c0_i32_78 : i32 to vector<8x1xi32>
    %228 = arith.cmpi ne, %226, %227 : vector<8x1xi32>
    %c0_i32_79 = arith.constant 0 : i32
    %229 = vector.broadcast %c0_i32_79 : i32 to vector<8x1xi32>
    %230 = arith.cmpi slt, %226, %229 : vector<8x1xi32>
    %c0_i32_80 = arith.constant 0 : i32
    %231 = arith.cmpi slt, %224, %c0_i32_80 : i32
    %232 = vector.broadcast %231 : i1 to vector<8x1xi1>
    %233 = vector.broadcast %232 : vector<8x1xi1> to vector<8x1xi1>
    %234 = arith.xori %230, %233 : vector<8x1xi1>
    %235 = arith.andi %234, %228 : vector<8x1xi1>
    %236 = vector.broadcast %224 : i32 to vector<8x1xi32>
    %237 = arith.addi %226, %236 : vector<8x1xi32>
    %238 = arith.select %235, %237, %226 : vector<8x1xi1>, vector<8x1xi32>
    %c0_i32_81 = arith.constant 0 : i32
    %239 = vector.broadcast %c0_i32_81 : i32 to vector<8x1xi32>
    %240 = arith.cmpi eq, %238, %239 : vector<8x1xi32>
    %241 = arith.andi %240, %198 : vector<8x1xi1>
    %242 = arith.cmpi eq, %211, %222 : vector<8x1xi32>
    %243 = arith.andi %241, %242 : vector<8x1xi1>
    %cst_82 = arith.constant 1.000000e+00 : f32
    %cst_83 = arith.constant 0.000000e+00 : f32
    %244 = vector.broadcast %cst_82 : f32 to vector<8x1xf32>
    %245 = vector.broadcast %cst_83 : f32 to vector<8x1xf32>
    %246 = arith.select %243, %244, %245 : vector<8x1xi1>, vector<8x1xf32>
    %cst_84 = arith.constant dense<0.000000e+00> : vector<1xf32>
    %247 = vector.multi_reduction <add>, %246, %cst_84 [0] : vector<8x1xf32> to vector<1xf32>
    %248 = vector.shape_cast %247 : vector<1xf32> to vector<1x1xf32>
    %cst_85 = arith.constant 5.000000e-01 : f32
    %249 = vector.broadcast %cst_85 : f32 to vector<1x1xf32>
    %250 = arith.mulf %248, %249 : vector<1x1xf32>
    %251 = tpu.iota {dimensions = array<i32: 1>} : vector<1x128xi32>
    %c0_i32_86 = arith.constant 0 : i32
    %252 = vector.broadcast %c0_i32_86 : i32 to vector<1x128xi32>
    %253 = arith.cmpi eq, %251, %252 : vector<1x128xi32>
    %c1_i32_87 = arith.constant 1 : i32
    %254 = vector.broadcast %c1_i32_87 : i32 to vector<1x128xi32>
    %255 = arith.cmpi eq, %251, %254 : vector<1x128xi32>
    %cst_88 = arith.constant 0.000000e+00 : f32
    %256 = vector.shape_cast %250 : vector<1x1xf32> to vector<1x1xf32>
    %257 = vector.broadcast %256 : vector<1x1xf32> to vector<1x128xf32>
    %258 = vector.broadcast %cst_88 : f32 to vector<1x128xf32>
    %259 = arith.select %255, %257, %258 : vector<1x128xi1>, vector<1x128xf32>
    %260 = vector.shape_cast %205 : vector<1x1xf32> to vector<1x1xf32>
    %261 = vector.broadcast %260 : vector<1x1xf32> to vector<1x128xf32>
    %262 = arith.select %253, %261, %259 : vector<1x128xi1>, vector<1x128xf32>
    %c0_89 = arith.constant 0 : index
    %c0_90 = arith.constant 0 : index
    %263 = vector.load %arg4[%c0_89, %c0_90] : memref<1x128xf32, #tpu.memory_space<vmem>>, vector<1x128xf32>
    tpu.vector_store %arg4[%c0_89, %c0_90], %262 {strides = array<i32>} : memref<1x128xf32, #tpu.memory_space<vmem>>, vector<1x128xf32>,
    return
  }
  func.func @transform_0(%arg0: i32, %arg1: memref<2x8xi32, #tpu.memory_space<smem>>, %arg2: memref<2x2xi32, #tpu.memory_space<smem>>) -> (i32, i32) {
    %c0_i32 = arith.constant 0 : i32
    %c0_i32_0 = arith.constant 0 : i32
    %c0_i32_1 = arith.constant 0 : i32
    return %c0_i32, %c0_i32_0 : i32, i32
  }
  func.func @transform_1(%arg0: i32, %arg1: memref<2x8xi32, #tpu.memory_space<smem>>, %arg2: memref<2x2xi32, #tpu.memory_space<smem>>) -> (i32, i32) {
    %c0_i32 = arith.constant 0 : i32
    %c0_i32_0 = arith.constant 0 : i32
    %c0_i32_1 = arith.constant 0 : i32
    return %c0_i32, %c0_i32_0 : i32, i32
  }
}

</mosaic_0001>

<llo_original>
// kernel: sentinel_forward.1
$region0: #{sentinel_forward.1}
  #allocation0 [shape = 'u32[]', space=smem, size = 0x4, offset = 0x4, fixed_abs, tag = 'smem constant byte address 0x4 - core index']
  #allocation1 [shape = 'u32[144,128]{1,0:T(1,128)}', space=vmem, size = 0x12000, scoped, tag = 'internal scratch']
  #allocation2 [shape = 's32[1]{0}', space=sflag, size = 0x4, scoped, tag = 'scoped memory for sentinel_forward.1']
  #allocation3 [shape = 'u8[1024]{0}', space=smem, size = 0x400, scoped, tag = 'prefetched SMEM operand 0']
  #allocation4 [shape = 'u8[1024]{0}', space=smem, size = 0x400, scoped, tag = 'prefetched SMEM operand 1']
  %s0 = inlined_call_operand.vmem [shape: s32[2,8], index: 0, kind: input, shape index: {}]
  %s1 = inlined_call_operand.vmem [shape: s32[2,2], index: 1, kind: input, shape index: {}]
  %s2 = inlined_call_operand.vmem [shape: bf16[128,128], index: 2, kind: input, shape index: {}]
  %s3 = inlined_call_operand.vmem [shape: f32[1,128], index: 3, kind: output, shape index: {}]
  %s4 = sld [smem:[#allocation0]]
  $region14: #{sentinel_forward.1} parent=0
    _
  %s6 = ssub.s32 1, %s4
  %s7 = scalar_select 0, %s6, %s4
  %s8 = sshll.u32 %s0, 4
  %s9 = int_to_ptr.vmem [resolvable:$true] %s8
  %11 = dma.vmem_to_smem %s9, 32, [#allocation3], [#allocation2]
  %s12 = sshll.u32 %s1, 4
  %s13 = int_to_ptr.vmem [resolvable:$true] %s12
  %15 = dma.vmem_to_smem %s13, 32, [#allocation4], [#allocation2]
  %16 = dma.done [#allocation2], 64
  %17 = sfence
  // Predicated region
  $region2: #{sentinel_forward.1} parent=0 // pred_check
    _
  $region3: #{sentinel_forward.1} parent=0 // pred_check_branch
    %19 = sbr.rel (0) target = $region5
  $region4: #{sentinel_forward.1} parent=0 // pred_region
    _
  $region5: #{sentinel_forward.1} parent=0 // pred_fallthru
    _
  %v21 = vlaneseq
  %v22 = vshrl.u32 %v21, 7
  %v23 = vlaneseq
  %v24 = vand.u32 %v23, 127
  %vm25 = vcmp.ge.s32.totalorder %v22, 0
  %vm26 = vcmp.lt.s32.totalorder %v22, 2
  %vm27 = vmand %vm25, %vm26
  %s28 = sld [smem:[#allocation3]]
  %v29 = vstv %s28
  %vm30 = vcmp.eq.s32.totalorder %v24, %v29
  %v31 = vsel %vm30, 1, 0
  %v32 = vcvt.s32.f32 %v31
  %v33 = vadd.f32 %v32, 0.0
  %s34 = sld [smem:[#allocation3 + $0x1]]
  %v35 = vstv %s34
  %vm36 = vcmp.eq.s32.totalorder %v24, %v35
  %v37 = vsel %vm36, 1, 0
  %v38 = vcvt.s32.f32 %v37
  %v39 = vadd.f32 %v33, %v38
  %s40 = sld [smem:[#allocation3 + $0x2]]
  %v41 = vstv %s40
  %vm42 = vcmp.eq.s32.totalorder %v24, %v41
  %v43 = vsel %vm42, 1, 0
  %v44 = vcvt.s32.f32 %v43
  %v45 = vadd.f32 %v39, %v44
  %s46 = sld [smem:[#allocation3 + $0x3]]
  %v47 = vstv %s46
  %vm48 = vcmp.eq.s32.totalorder %v24, %v47
  %v49 = vsel %vm48, 1, 0
  %v50 = vcvt.s32.f32 %v49
  %v51 = vadd.f32 %v45, %v50
  %s52 = sld [smem:[#allocation3 + $0x4]]
  %v53 = vstv %s52
  %vm54 = vcmp.eq.s32.totalorder %v24, %v53
  %v55 = vsel %vm54, 1, 0
  %v56 = vcvt.s32.f32 %v55
  %v57 = vadd.f32 %v51, %v56
  %s58 = sld [smem:[#allocation3 + $0x5]]
  %v59 = vstv %s58
  %vm60 = vcmp.eq.s32.totalorder %v24, %v59
  %v61 = vsel %vm60, 1, 0
  %v62 = vcvt.s32.f32 %v61
  %v63 = vadd.f32 %v57, %v62
  %s64 = sld [smem:[#allocation3 + $0x6]]
  %v65 = vstv %s64
  %vm66 = vcmp.eq.s32.totalorder %v24, %v65
  %v67 = vsel %vm66, 1, 0
  %v68 = vcvt.s32.f32 %v67
  %v69 = vadd.f32 %v63, %v68
  %s70 = sld [smem:[#allocation3 + $0x7]]
  %v71 = vstv %s70
  %vm72 = vcmp.eq.s32.totalorder %v24, %v71
  %v73 = vsel %vm72, 1, 0
  %v74 = vcvt.s32.f32 %v73
  %v75 = vadd.f32 %v69, %v74
  %v76 = vmul.f32 %v75, 0.125
  %v77 = vsel %vm27, %v76, 0.0
  %v78 = vadd.f32 %v77, 0.0
  %vm79 = vcmp.eq.s32.totalorder %v22, 0
  %vm80 = vcmp.eq.s32.totalorder %v24, 0
  %vm81 = vmand %vm79, %vm80
  %v82 = vsel %vm81, 1.0, 0.0
  %v83 = vadd.f32 %v78, %v82
  %s84 = sld [smem:[#allocation4]]
  %v85 = vstv %s84
  %vm86 = vcmp.eq.s32.totalorder %v24, %v85
  %vm87 = vmand %vm79, %vm86
  %vm88 = vcmp.eq.s32.totalorder %v22, 1
  %vm89 = vmand %vm88, %vm86
  %v90 = vsel %vm89, 1.0, 0.0
  %v91 = vadd.f32 %v83, %v90
  %s92 = sld [smem:[#allocation4 + $0x1]]
  %v93 = vstv %s92
  %vm94 = vcmp.eq.s32.totalorder %v24, %v93
  %vm95 = vmand %vm88, %vm94
  %vm96 = vmor %vm87, %vm95
  %vm97 = vcmp.ge.s32.totalorder %v22, 2
  %vm98 = vcmp.lt.s32.totalorder %v22, 4
  %vm99 = vmand %vm97, %vm98
  %s100 = sld [smem:[#allocation3 + $0x80]]
  %v101 = vstv %s100
  %vm102 = vcmp.eq.s32.totalorder %v24, %v101
  %v103 = vsel %vm102, 1, 0
  %v104 = vcvt.s32.f32 %v103
  %v105 = vadd.f32 %v104, 0.0
  %s106 = sld [smem:[#allocation3 + $0x81]]
  %v107 = vstv %s106
  %vm108 = vcmp.eq.s32.totalorder %v24, %v107
  %v109 = vsel %vm108, 1, 0
  %v110 = vcvt.s32.f32 %v109
  %v111 = vadd.f32 %v105, %v110
  %s112 = sld [smem:[#allocation3 + $0x82]]
  %v113 = vstv %s112
  %vm114 = vcmp.eq.s32.totalorder %v24, %v113
  %v115 = vsel %vm114, 1, 0
  %v116 = vcvt.s32.f32 %v115
  %v117 = vadd.f32 %v111, %v116
  %s118 = sld [smem:[#allocation3 + $0x83]]
  %v119 = vstv %s118
  %vm120 = vcmp.eq.s32.totalorder %v24, %v119
  %v121 = vsel %vm120, 1, 0
  %v122 = vcvt.s32.f32 %v121
  %v123 = vadd.f32 %v117, %v122
  %s124 = sld [smem:[#allocation3 + $0x84]]
  %v125 = vstv %s124
  %vm126 = vcmp.eq.s32.totalorder %v24, %v125
  %v127 = vsel %vm126, 1, 0
  %v128 = vcvt.s32.f32 %v127
  %v129 = vadd.f32 %v123, %v128
  %s130 = sld [smem:[#allocation3 + $0x85]]
  %v131 = vstv %s130
  %vm132 = vcmp.eq.s32.totalorder %v24, %v131
  %v133 = vsel %vm132, 1, 0
  %v134 = vcvt.s32.f32 %v133
  %v135 = vadd.f32 %v129, %v134
  %s136 = sld [smem:[#allocation3 + $0x86]]
  %v137 = vstv %s136
  %vm138 = vcmp.eq.s32.totalorder %v24, %v137
  %v139 = vsel %vm138, 1, 0
  %v140 = vcvt.s32.f32 %v139
  %v141 = vadd.f32 %v135, %v140
  %s142 = sld [smem:[#allocation3 + $0x87]]
  %v143 = vstv %s142
  %vm144 = vcmp.eq.s32.totalorder %v24, %v143
  %v145 = vsel %vm144, 1, 0
  %v146 = vcvt.s32.f32 %v145
  %v147 = vadd.f32 %v141, %v146
  %v148 = vmul.f32 %v147, 0.125
  %v149 = vsel %vm99, %v148, 0.0
  %v150 = vadd.f32 %v91, %v149
  %vm151 = vcmp.eq.s32.totalorder %v22, 2
  %vm152 = vmand %vm151, %vm80
  %v153 = vsel %vm152, 1.0, 0.0
  %v154 = vadd.f32 %v150, %v153
  %s155 = sld [smem:[#allocation4 + $0x80]]
  %v156 = vstv %s155
  %vm157 = vcmp.eq.s32.totalorder %v24, %v156
  %vm158 = vmand %vm151, %vm157
  %vm159 = vmor %vm96, %vm158
  %vm160 = vcmp.eq.s32.totalorder %v22, 3
  %vm161 = vmand %vm160, %vm157
  %v162 = vsel %vm161, 1.0, 0.0
  %v163 = vadd.f32 %v154, %v162
  %s164 = sld [smem:[#allocation4 + $0x81]]
  %v165 = vstv %s164
  %vm166 = vcmp.eq.s32.totalorder %v24, %v165
  %vm167 = vmand %vm160, %vm166
  %vm168 = vmor %vm159, %vm167
  %v169 = vpack.c.bf16 %v163, %v163
  %v170 = vld [vmem:[%s2] sm:$0xf]
  %v171 = vld [vmem:[%s2 + $0x4] sm:$0xf]
  %v172 = vld [vmem:[%s2 + $0x8] sm:$0xf]
  %v173 = vld [vmem:[%s2 + $0xc] sm:$0xf]
  %v174 = vld [vmem:[%s2 + $0x10] sm:$0xf]
  %v175 = vld [vmem:[%s2 + $0x14] sm:$0xf]
  %v176 = vld [vmem:[%s2 + $0x18] sm:$0xf]
  %v177 = vld [vmem:[%s2 + $0x1c] sm:$0xf]
  %v178 = vld [vmem:[%s2 + $0x20] sm:$0xf]
  %v179 = vld [vmem:[%s2 + $0x24] sm:$0xf]
  %v180 = vld [vmem:[%s2 + $0x28] sm:$0xf]
  %v181 = vld [vmem:[%s2 + $0x2c] sm:$0xf]
  %v182 = vld [vmem:[%s2 + $0x30] sm:$0xf]
  %v183 = vld [vmem:[%s2 + $0x34] sm:$0xf]
  %v184 = vld [vmem:[%s2 + $0x38] sm:$0xf]
  %v185 = vld [vmem:[%s2 + $0x3c] sm:$0xf]
  %v202 = vunpack.c.l.b16 %v170
  %v203 = vunpack.c.l.b16 %v171
  %v204 = vunpack.c.l.b16 %v172
  %v205 = vunpack.c.l.b16 %v173
  %v206 = vunpack.c.l.b16 %v174
  %v207 = vunpack.c.l.b16 %v175
  %v208 = vunpack.c.l.b16 %v176
  %v209 = vunpack.c.l.b16 %v177
  %v210 = vunpack.c.l.b16 %v178
  %v211 = vunpack.c.l.b16 %v179
  %v212 = vunpack.c.l.b16 %v180
  %v213 = vunpack.c.l.b16 %v181
  %v214 = vunpack.c.l.b16 %v182
  %v215 = vunpack.c.l.b16 %v183
  %v216 = vunpack.c.l.b16 %v184
  %v217 = vunpack.c.l.b16 %v185
  %v218 = vpack.c.b16 %v203, %v202
  %v219 = vpack.c.b16 %v205, %v204
  %v220 = vpack.c.b16 %v207, %v206
  %v221 = vpack.c.b16 %v209, %v208
  %v222 = vpack.c.b16 %v211, %v210
  %v223 = vpack.c.b16 %v213, %v212
  %v224 = vpack.c.b16 %v215, %v214
  %v225 = vpack.c.b16 %v217, %v216
  %234 = vmatprep.subr.bf16.mxu0 0
  %235 = vmatpush1.bf16.msra.mxu0 %v218
  %236 = vmatprep.subr.bf16.mxu0 0
  %237 = vmatpush1.bf16.msra.mxu0 %v219
  %238 = vmatprep.subr.bf16.mxu0 0
  %239 = vmatpush1.bf16.msra.mxu0 %v220
  %240 = vmatprep.subr.bf16.mxu0 0
  %241 = vmatpush1.bf16.msra.mxu0 %v221
  %242 = vmatprep.subr.bf16.mxu0 0
  %243 = vmatpush1.bf16.msra.mxu0 %v222
  %244 = vmatprep.subr.bf16.mxu0 0
  %245 = vmatpush1.bf16.msra.mxu0 %v223
  %246 = vmatprep.subr.bf16.mxu0 0
  %247 = vmatpush1.bf16.msra.mxu0 %v224
  %248 = vmatprep.subr.bf16.mxu0 0
  %249 = vmatpush1.bf16.msra.mxu0 %v225
  %250 = vmatprep.subr.bf16.mxu0 0
  %251 = vmatpush1.bf16.msra.mxu0 0
  %252 = vmatprep.subr.bf16.mxu0 0
  %253 = vmatpush1.bf16.msra.mxu0 0
  %254 = vmatprep.subr.bf16.mxu0 0
  %255 = vmatpush1.bf16.msra.mxu0 0
  %256 = vmatprep.subr.bf16.mxu0 0
  %257 = vmatpush1.bf16.msra.mxu0 0
  %258 = vmatprep.subr.bf16.mxu0 0
  %259 = vmatpush1.bf16.msra.mxu0 0
  %260 = vmatprep.subr.bf16.mxu0 0
  %261 = vmatpush1.bf16.msra.mxu0 0
  %262 = vmatprep.subr.bf16.mxu0 0
  %263 = vmatpush1.bf16.msra.mxu0 0
  %264 = vmatprep.subr.bf16.mxu0 0
  %265 = vmatpush1.bf16.msra.mxu0 0
  %266 = vmatprep.mubr.bf16.mxu0 0
  %267 = vmatmul.mubr.bf16.gmra.mrb[0].mxu0 %v169
  %v268 = vpop.f32.mrb[0].mxu0
  %v269 = vadd.f32 0.0, %v268
  %v270 = vpop.f32.mrb[0].mxu0
  %v271 = vpop.f32.mrb[0].mxu0
  %v272 = vpop.f32.mrb[0].mxu0
  %273 = vdwg.mxu0
  %274 = vmax.xlane.f32.xlu0 %v269
  %v275 = vpop.xlane.xlu0 %274
  %v276 = vsub.f32 %v269, %v275
  %v277 = vmul.f32 %v276, 1.442695
  %v278 = vpow.pop %v277
  %279 = vadd.xlane.f32.xlu0 %v278
  %v280 = vpop.xlane.xlu0 %279
  %v281 = vlog2.pop %v280
  %v282 = vmul.f32 %v281, 0.6931472
  %v283 = vadd.f32 %v275, %v282
  %v284 = vsel %vm168, %v269, 0.0
  %285 = vadd.xlane.f32.xlu0 %v284
  %v286 = vpop.xlane.xlu0 %285
  %v287 = vsub.f32 %v283, %v286
  %v288 = vsel %vm98, %v287, 0.0
  %v289 = vrot.slane %v288, 4
  %v290 = vadd.f32 %v288, %v289
  %v291 = vrot.slane %v290, 2
  %v292 = vadd.f32 %v290, %v291
  %v293 = vrot.slane %v292, 1
  %v294 = vadd.f32 %v292, %v293
  %v295 = vmul.f32 %v294, 0.25
  %vm296 = vcmp.eq.f32.partialorder %v276, 0.0
  %v297 = vsel %vm296, %v24, 128
  %v298 = vand.u32 %v297, 65535
  %v299 = vshra.s32 %v297, 16
  %v300 = vcvt.s32.f32 %v298
  %v301 = vcvt.s32.f32 %v299
  %302 = vmin.xlane.f32.xlu0 %v301
  %v303 = vpop.xlane.xlu0 %302
  %vm304 = vcmp.eq.f32.partialorder %v301, %v303
  %v305 = vsel %vm304, %v300, inf
  %306 = vmin.xlane.f32.xlu0 %v305
  %v307 = vpop.xlane.xlu0 %306
  %v308 = vcvt.f32.s32 %v307
  %v309 = vcvt.f32.s32 %v303
  %v310 = vshll.u32 %v309, 16
  %v311 = vadd.s32 %v310, %v308
  %v312 = vsel %vm79, %v85, 0
  %v313 = vsel %vm151, %v156, %v312
  %vm314 = vcmp.lt.s32.totalorder %v22, 0
  %v315 = vsub.s32 0, %v22
  %v316 = vsel %vm314, %v315, %v22
  %v317 = vshrl.u32 %v316, 1
  %v318 = vand.u32 %v316, 1
  %v319 = vsub.s32 0, %v318
  %v320 = vsel %vm314, %v319, %v318
  %vm321 = vcmp.ne.s32.totalorder %v320, 0
  %vm322 = vcmp.lt.s32.totalorder %v320, 0
  %vm323 = vmand %vm322, %vm321
  %v324 = vadd.s32 %v320, 2
  %v325 = vsel %vm323, %v324, %v320
  %vm326 = vcmp.eq.s32.totalorder %v325, 0
  %vm327 = vmand %vm326, %vm98
  %vm328 = vcmp.eq.s32.totalorder %v311, %v313
  %vm329 = vmand %vm327, %vm328
  %v330 = vsel %vm329, 1.0, 0.0
  %v331 = vrot.slane %v330, 4
  %v332 = vadd.f32 %v330, %v331
  %v333 = vrot.slane %v332, 2
  %v334 = vadd.f32 %v332, %v333
  %v335 = vrot.slane %v334, 1
  %v336 = vadd.f32 %v334, %v335
  %v337 = vmul.f32 %v336, 0.5
  %vm338 = vcmp.eq.s32.totalorder %v24, 1
  %v339 = vsel %vm338, %v337, 0.0
  %v340 = vsel %vm80, %v295, %v339
  %341 = vst [vmem:[%s3] sm:$0x1] %v340
  // Predicated region
  $region6: #{sentinel_forward.1} parent=0 // pred_check
    _
  $region7: #{sentinel_forward.1} parent=0 // pred_check_branch
    %343 = sbr.rel (0) target = $region9
  $region8: #{sentinel_forward.1} parent=0 // pred_region
    _
  $region9: #{sentinel_forward.1} parent=0 // pred_fallthru
    _
  // Predicated region
  $region10: #{sentinel_forward.1} parent=0 // pred_check
    _
  $region11: #{sentinel_forward.1} parent=0 // pred_check_branch
    %345 = sbr.rel (0) target = $region13
  $region12: #{sentinel_forward.1} parent=0 // pred_region
    _
  $region13: #{sentinel_forward.1} parent=0 // pred_fallthru
    _

</llo_original>
